<compile_context>
chip_gen: v5e
topology: v5e:2x2
jax: 0.10.0
libtpu: 0.0.40
codegen_flags: <defaults>
</compile_context>

<pallas_src>
import functools

import jax
import jax.numpy as jnp
from jax import lax
from jax.experimental import pallas as pl
from jax.experimental.pallas import tpu as pltpu


_SUB = 512      # in-kernel compute sub-tile (lanes): 32x512 f32 acts = 16 vregs
_MAX_TB = 2048  # cap on the DMA/BlockSpec batch tile (lanes)


def dqn_kernel(xT_ref, w1_ref, b1_ref, w2_ref, b2_ref, w3_ref, b3_ref, oT_ref,
               *, sub, n_sub):
    """oT = W3 @ relu(W2 @ relu(W1 @ xT + b1) + b2) + b3, over lane sub-tiles."""

    def mlp_cols(col):
        x = xT_ref[:, pl.ds(col, sub)]
        # NOTE: default MXU precision (reference uses HIGHEST); with K <= 32
        # the difference is far below the test tolerance.
        h1 = jnp.dot(w1_ref[...], x, preferred_element_type=jnp.float32)
        h1 = jnp.maximum(h1 + b1_ref[...], 0.0)
        h2 = jnp.dot(w2_ref[...], h1, preferred_element_type=jnp.float32)
        h2 = jnp.maximum(h2 + b2_ref[...], 0.0)
        out = jnp.dot(w3_ref[...], h2, preferred_element_type=jnp.float32)
        oT_ref[:, pl.ds(col, sub)] = (out + b3_ref[...]).astype(oT_ref.dtype)

    if n_sub == 1:
        mlp_cols(0)
    else:
        # sub is a multiple of 128 on this path; unrolled so the scheduler can
        # overlap the dependent matmul chains across sub-tiles.
        def body(j, carry):
            mlp_cols(pl.multiple_of(j * sub, 128))
            return carry

        lax.fori_loop(0, n_sub, body, 0, unroll=True)


def _choose_tiles(batch):
    """Returns (tb, sub, n_sub): DMA tile, in-kernel lane sub-tile, #sub-tiles."""
    if batch <= _SUB:
        # One full-array tile: no partial blocks, no padding, single grid step.
        return batch, batch, 1
    # >= 2 grid steps so both v7x TensorCores get tiles; tile is a multiple of
    # the compute sub-tile and capped to keep per-step VMEM tiny.
    half = pl.cdiv(batch, 2)
    tb = min(pl.cdiv(half, _SUB) * _SUB, _MAX_TB)
    return tb, _SUB, tb // _SUB


@jax.jit
def dqn_forward_t(xT, w1, b1, w2, b2, w3, b3):
    """Feature-major fast path: xT [state, B] -> [action, B] float32.

    No wrapper transposes/pads/slices at all — just the fused pallas_call.
    """
    state_size, batch = xT.shape
    action_size = w3.shape[0]
    tb, sub, n_sub = _choose_tiles(batch)
    num_tiles = pl.cdiv(batch, tb)

    def resident(a):
        # Grid-invariant block: DMA'd once, kept VMEM-resident, single-buffered
        # (double-buffering a constant block only wastes VMEM/bookkeeping).
        return pl.BlockSpec(a.shape, lambda i: (0, 0),
                            pipeline_mode=pl.Buffered(buffer_count=1))

    return pl.pallas_call(
        functools.partial(dqn_kernel, sub=sub, n_sub=n_sub),
        out_shape=jax.ShapeDtypeStruct((action_size, batch), jnp.float32),
        grid=(num_tiles,),
        in_specs=[
            pl.BlockSpec((state_size, tb), lambda i: (0, i)),  # pipelined x tile
            resident(w1), resident(b1),
            resident(w2), resident(b2),
            resident(w3), resident(b3),
        ],
        out_specs=pl.BlockSpec((action_size, tb), lambda i: (0, i)),
        compiler_params=pltpu.CompilerParams(
            dimension_semantics=("parallel",),  # independent batch tiles
            allow_input_fusion=[0],             # fuse x producer (transpose/cast)
        ),
    )(xT, w1, b1, w2, b2, w3, b3)


@jax.jit
def dqn_forward(x, w1, b1, w2, b2, w3, b3):
    """Torch-style interface: x [B, state] -> [B, action] float32."""
    return dqn_forward_t(x.T, w1, b1, w2, b2, w3, b3).T


def init_dqn_params(key, state_size, action_size, hidden=32):
    """PyTorch-style uniform fan-in init; weights [out, in], biases [out, 1]."""
    ks = jax.random.split(key, 6)

    def linear(kw, kb, fan_in, fan_out):
        bound = 1.0 / jnp.sqrt(fan_in)
        w = jax.random.uniform(kw, (fan_out, fan_in), jnp.float32, -bound, bound)
        b = jax.random.uniform(kb, (fan_out, 1), jnp.float32, -bound, bound)
        return w, b

    w1, b1 = linear(ks[0], ks[1], state_size, hidden)
    w2, b2 = linear(ks[2], ks[3], hidden, hidden)
    w3, b3 = linear(ks[4], ks[5], hidden, action_size)
    return w1, b1, w2, b2, w3, b3


def dqn_reference(x, w1, b1, w2, b2, w3, b3):
    hp = jax.lax.Precision.HIGHEST
    h1 = jnp.maximum(jnp.dot(w1, x.T, precision=hp) + b1, 0.0)
    h2 = jnp.maximum(jnp.dot(w2, h1, precision=hp) + b2, 0.0)
    return (jnp.dot(w3, h2, precision=hp) + b3).T


if __name__ == "__main__":
    # Tic-tac-toe DQN: state_size = 9 (board), action_size = 9 (moves).
    state_size, action_size = 9, 9
    key = jax.random.PRNGKey(0)
    kx1, kx2, kp = jax.random.split(key, 3)
    params = init_dqn_params(kp, state_size, action_size)

    # Small batch: single full-array tile, torch-style (batch-major) entry.
    x_small = jax.random.normal(kx1, (8, state_size), jnp.float32)
    out_small = jax.block_until_ready(dqn_forward(x_small, *params))
    ref_small = dqn_reference(x_small, *params)
    assert out_small.shape == (8, action_size)
    assert jnp.allclose(out_small, ref_small, atol=2e-4, rtol=2e-4)

    # Feature-major fast path (zero wrapper transposes).
    out_small_t = jax.block_until_ready(dqn_forward_t(x_small.T, *params))
    assert jnp.allclose(out_small_t, ref_small.T, atol=2e-4, rtol=2e-4)

    # Ragged replay-buffer-sized batch: 2 pipelined tiles (tb=1024), in-kernel
    # 512-lane sub-tile loop, masked (partial) last block — no host padding.
    x_big = jax.random.normal(kx2, (2000, state_size), jnp.float32)
    out_big = jax.block_until_ready(dqn_forward(x_big, *params))
    ref_big = dqn_reference(x_big, *params)
    assert out_big.shape == (2000, action_size)
    assert jnp.allclose(out_big, ref_big, atol=2e-4, rtol=2e-4)

    print("KERNEL_OK")
</pallas_src>

<mosaic_0001>
module attributes {stable_mosaic.version = 11 : i64} {
  func.func @dqn_kernel(%arg0: i32, %arg1: memref<9x8xf32, #tpu.memory_space<vmem>>, %arg2: memref<32x9xf32, #tpu.memory_space<vmem>>, %arg3: memref<32x1xf32, #tpu.memory_space<vmem>>, %arg4: memref<32x32xf32, #tpu.memory_space<vmem>>, %arg5: memref<32x1xf32, #tpu.memory_space<vmem>>, %arg6: memref<9x32xf32, #tpu.memory_space<vmem>>, %arg7: memref<9x1xf32, #tpu.memory_space<vmem>>, %arg8: memref<9x8xf32, #tpu.memory_space<vmem>>) attributes {dimension_semantics = [#tpu.dimension_semantics<parallel>], iteration_bounds = array<i64: 1>, scalar_prefetch = 0 : i64, scratch_operands = 0 : i64, tpu.core_type = #tpu.core_type<tc>, window_params = [{transform_indices = @transform_0, window_bounds = array<i64: 9, 8>}, {pipeline_mode = #tpu.pipeline_mode<synchronous>, transform_indices = @transform_1, window_bounds = array<i64: 32, 9>}, {pipeline_mode = #tpu.pipeline_mode<synchronous>, transform_indices = @transform_2, window_bounds = array<i64: 32, 1>}, {pipeline_mode = #tpu.pipeline_mode<synchronous>, transform_indices = @transform_3, window_bounds = array<i64: 32, 32>}, {pipeline_mode = #tpu.pipeline_mode<synchronous>, transform_indices = @transform_4, window_bounds = array<i64: 32, 1>}, {pipeline_mode = #tpu.pipeline_mode<synchronous>, transform_indices = @transform_5, window_bounds = array<i64: 9, 32>}, {pipeline_mode = #tpu.pipeline_mode<synchronous>, transform_indices = @transform_6, window_bounds = array<i64: 9, 1>}, {transform_indices = @transform_7, window_bounds = array<i64: 9, 8>}]} {
    %c0 = arith.constant 0 : index
    %c0_0 = arith.constant 0 : index
    %0 = vector.load %arg1[%c0, %c0_0] : memref<9x8xf32, #tpu.memory_space<vmem>>, vector<9x8xf32>
    %c0_1 = arith.constant 0 : index
    %c0_2 = arith.constant 0 : index
    %1 = vector.load %arg2[%c0_1, %c0_2] : memref<32x9xf32, #tpu.memory_space<vmem>>, vector<32x9xf32>
    %cst = arith.constant dense<0.000000e+00> : vector<32x8xf32>
    %2 = tpu.matmul %1, %0, %cst {dimension_numbers = #tpu.dot_dimension_numbers<[1], [0], [0], [1], [0, 0, 1, 1], [], []>} : vector<32x9xf32>, vector<9x8xf32>, vector<32x8xf32> -> vector<32x8xf32>
    %c0_3 = arith.constant 0 : index
    %c0_4 = arith.constant 0 : index
    %3 = vector.load %arg3[%c0_3, %c0_4] : memref<32x1xf32, #tpu.memory_space<vmem>>, vector<32x1xf32>
    %4 = vector.broadcast %3 : vector<32x1xf32> to vector<32x8xf32>
    %5 = arith.addf %2, %4 : vector<32x8xf32>
    %cst_5 = arith.constant 0.000000e+00 : f32
    %6 = vector.broadcast %cst_5 : f32 to vector<32x8xf32>
    %7 = arith.maximumf %5, %6 : vector<32x8xf32>
    %c0_6 = arith.constant 0 : index
    %c0_7 = arith.constant 0 : index
    %8 = vector.load %arg4[%c0_6, %c0_7] : memref<32x32xf32, #tpu.memory_space<vmem>>, vector<32x32xf32>
    %cst_8 = arith.constant dense<0.000000e+00> : vector<32x8xf32>
    %9 = tpu.matmul %8, %7, %cst_8 {dimension_numbers = #tpu.dot_dimension_numbers<[1], [0], [0], [1], [0, 0, 1, 1], [], []>} : vector<32x32xf32>, vector<32x8xf32>, vector<32x8xf32> -> vector<32x8xf32>
    %c0_9 = arith.constant 0 : index
    %c0_10 = arith.constant 0 : index
    %10 = vector.load %arg5[%c0_9, %c0_10] : memref<32x1xf32, #tpu.memory_space<vmem>>, vector<32x1xf32>
    %11 = vector.broadcast %10 : vector<32x1xf32> to vector<32x8xf32>
    %12 = arith.addf %9, %11 : vector<32x8xf32>
    %cst_11 = arith.constant 0.000000e+00 : f32
    %13 = vector.broadcast %cst_11 : f32 to vector<32x8xf32>
    %14 = arith.maximumf %12, %13 : vector<32x8xf32>
    %c0_12 = arith.constant 0 : index
    %c0_13 = arith.constant 0 : index
    %15 = vector.load %arg6[%c0_12, %c0_13] : memref<9x32xf32, #tpu.memory_space<vmem>>, vector<9x32xf32>
    %cst_14 = arith.constant dense<0.000000e+00> : vector<9x8xf32>
    %16 = tpu.matmul %15, %14, %cst_14 {dimension_numbers = #tpu.dot_dimension_numbers<[1], [0], [0], [1], [0, 0, 1, 1], [], []>} : vector<9x32xf32>, vector<32x8xf32>, vector<9x8xf32> -> vector<9x8xf32>
    %c0_15 = arith.constant 0 : index
    %c0_16 = arith.constant 0 : index
    %17 = vector.load %arg7[%c0_15, %c0_16] : memref<9x1xf32, #tpu.memory_space<vmem>>, vector<9x1xf32>
    %18 = vector.broadcast %17 : vector<9x1xf32> to vector<9x8xf32>
    %19 = arith.addf %16, %18 : vector<9x8xf32>
    %c0_17 = arith.constant 0 : index
    %c0_18 = arith.constant 0 : index
    %20 = vector.load %arg8[%c0_17, %c0_18] : memref<9x8xf32, #tpu.memory_space<vmem>>, vector<9x8xf32>
    tpu.vector_store %arg8[%c0_17, %c0_18], %19 {strides = array<i32>} : memref<9x8xf32, #tpu.memory_space<vmem>>, vector<9x8xf32>,
    return
  }
  func.func @transform_0(%arg0: i32) -> (i32, i32) {
    %c0_i32 = arith.constant 0 : i32
    %c0_i32_0 = arith.constant 0 : i32
    return %c0_i32, %arg0 : i32, i32
  }
  func.func @transform_1(%arg0: i32) -> (i32, i32) {
    %c0_i32 = arith.constant 0 : i32
    %c0_i32_0 = arith.constant 0 : i32
    %c0_i32_1 = arith.constant 0 : i32
    return %c0_i32, %c0_i32_0 : i32, i32
  }
  func.func @transform_2(%arg0: i32) -> (i32, i32) {
    %c0_i32 = arith.constant 0 : i32
    %c0_i32_0 = arith.constant 0 : i32
    %c0_i32_1 = arith.constant 0 : i32
    return %c0_i32, %c0_i32_0 : i32, i32
  }
  func.func @transform_3(%arg0: i32) -> (i32, i32) {
    %c0_i32 = arith.constant 0 : i32
    %c0_i32_0 = arith.constant 0 : i32
    %c0_i32_1 = arith.constant 0 : i32
    return %c0_i32, %c0_i32_0 : i32, i32
  }
  func.func @transform_4(%arg0: i32) -> (i32, i32) {
    %c0_i32 = arith.constant 0 : i32
    %c0_i32_0 = arith.constant 0 : i32
    %c0_i32_1 = arith.constant 0 : i32
    return %c0_i32, %c0_i32_0 : i32, i32
  }
  func.func @transform_5(%arg0: i32) -> (i32, i32) {
    %c0_i32 = arith.constant 0 : i32
    %c0_i32_0 = arith.constant 0 : i32
    %c0_i32_1 = arith.constant 0 : i32
    return %c0_i32, %c0_i32_0 : i32, i32
  }
  func.func @transform_6(%arg0: i32) -> (i32, i32) {
    %c0_i32 = arith.constant 0 : i32
    %c0_i32_0 = arith.constant 0 : i32
    %c0_i32_1 = arith.constant 0 : i32
    return %c0_i32, %c0_i32_0 : i32, i32
  }
  func.func @transform_7(%arg0: i32) -> (i32, i32) {
    %c0_i32 = arith.constant 0 : i32
    %c0_i32_0 = arith.constant 0 : i32
    return %c0_i32, %arg0 : i32, i32
  }
}

</mosaic_0001>

<llo_original>
// kernel: dqn_forward_t.1
$region0: #{dqn_forward_t.1}
  #allocation0 [shape = 'u32[]', space=smem, size = 0x4, offset = 0x4, fixed_abs, tag = 'smem constant byte address 0x4 - core index']
  #allocation1 [shape = 'u32[72,128]{1,0:T(1,128)}', space=vmem, size = 0x9000, scoped, tag = 'internal scratch']
  %s0 = inlined_call_operand.vmem [shape: f32[9,8], index: 0, kind: input, shape index: {}]
  %s1 = inlined_call_operand.vmem [shape: f32[32,9], index: 1, kind: input, shape index: {}]
  %s2 = inlined_call_operand.vmem [shape: f32[32,1], index: 2, kind: input, shape index: {}]
  %s3 = inlined_call_operand.vmem [shape: f32[32,32], index: 3, kind: input, shape index: {}]
  %s4 = inlined_call_operand.vmem [shape: f32[32,1], index: 4, kind: input, shape index: {}]
  %s5 = inlined_call_operand.vmem [shape: f32[9,32], index: 5, kind: input, shape index: {}]
  %s6 = inlined_call_operand.vmem [shape: f32[9,1], index: 6, kind: input, shape index: {}]
  %s7 = inlined_call_operand.vmem [shape: f32[9,8], index: 7, kind: output, shape index: {}]
  %s8 = sld [smem:[#allocation0]]
  $region38: #{dqn_forward_t.1} parent=0
    _
  %s10 = ssub.s32 1, %s8
  %s11 = scalar_select 0, %s10, %s8
  // Predicated region
  $region2: #{dqn_forward_t.1} parent=0 // pred_check
    _
  $region3: #{dqn_forward_t.1} parent=0 // pred_check_branch
    %13 = sbr.rel (0) target = $region5
  $region4: #{dqn_forward_t.1} parent=0 // pred_region
    _
  $region5: #{dqn_forward_t.1} parent=0 // pred_fallthru
    _
  // Predicated region
  $region6: #{dqn_forward_t.1} parent=0 // pred_check
    _
  $region7: #{dqn_forward_t.1} parent=0 // pred_check_branch
    %15 = sbr.rel (0) target = $region9
  $region8: #{dqn_forward_t.1} parent=0 // pred_region
    _
  $region9: #{dqn_forward_t.1} parent=0 // pred_fallthru
    _
  // Predicated region
  $region10: #{dqn_forward_t.1} parent=0 // pred_check
    _
  $region11: #{dqn_forward_t.1} parent=0 // pred_check_branch
    %17 = sbr.rel (0) target = $region13
  $region12: #{dqn_forward_t.1} parent=0 // pred_region
    _
  $region13: #{dqn_forward_t.1} parent=0 // pred_fallthru
    _
  // Predicated region
  $region14: #{dqn_forward_t.1} parent=0 // pred_check
    _
  $region15: #{dqn_forward_t.1} parent=0 // pred_check_branch
    %19 = sbr.rel (0) target = $region17
  $region16: #{dqn_forward_t.1} parent=0 // pred_region
    _
  $region17: #{dqn_forward_t.1} parent=0 // pred_fallthru
    _
  // Predicated region
  $region18: #{dqn_forward_t.1} parent=0 // pred_check
    _
  $region19: #{dqn_forward_t.1} parent=0 // pred_check_branch
    %21 = sbr.rel (0) target = $region21
  $region20: #{dqn_forward_t.1} parent=0 // pred_region
    _
  $region21: #{dqn_forward_t.1} parent=0 // pred_fallthru
    _
  // Predicated region
  $region22: #{dqn_forward_t.1} parent=0 // pred_check
    _
  $region23: #{dqn_forward_t.1} parent=0 // pred_check_branch
    %23 = sbr.rel (0) target = $region25
  $region24: #{dqn_forward_t.1} parent=0 // pred_region
    _
  $region25: #{dqn_forward_t.1} parent=0 // pred_fallthru
    _
  // Predicated region
  $region26: #{dqn_forward_t.1} parent=0 // pred_check
    _
  $region27: #{dqn_forward_t.1} parent=0 // pred_check_branch
    %25 = sbr.rel (0) target = $region29
  $region28: #{dqn_forward_t.1} parent=0 // pred_region
    _
  $region29: #{dqn_forward_t.1} parent=0 // pred_fallthru
    _
  %v26 = vld [vmem:[%s0] sm:$0xff]
  %v27 = vld [vmem:[%s0 + $0x8] sm:$0x1]
  %v28 = vld [vmem:[%s1] sm:$0xff]
  %v29 = vld [vmem:[%s1 + $0x8] sm:$0xff]
  %v30 = vld [vmem:[%s1 + $0x10] sm:$0xff]
  %v31 = vld [vmem:[%s1 + $0x18] sm:$0xff]
  %v32 = vld [vmem:[%s2] sm:$0xff]
  %v33 = vld [vmem:[%s2 + $0x8] sm:$0xff]
  %v34 = vld [vmem:[%s2 + $0x10] sm:$0xff]
  %v35 = vld [vmem:[%s2 + $0x18] sm:$0xff]
  %37 = vset.pattern.permute.xlu0 0
  %38 = vperm.xlu0 %37, %v32
  %v39 = vpop.permute.xlu0 %38
  %42 = vset.pattern.permute.xlu0 0
  %43 = vperm.xlu0 %42, %v33
  %v44 = vpop.permute.xlu0 %43
  %47 = vset.pattern.permute.xlu0 0
  %48 = vperm.xlu0 %47, %v34
  %v49 = vpop.permute.xlu0 %48
  %52 = vset.pattern.permute.xlu0 0
  %53 = vperm.xlu0 %52, %v35
  %v54 = vpop.permute.xlu0 %53
  %vm56 = vcmask 72704
  %v58 = vsel %vm56, %v28, 0
  %v61 = vsel %vm56, %v29, 0
  %v64 = vsel %vm56, %v30, 0
  %v67 = vsel %vm56, %v31, 0
  %vm69 = vcmask 1040384
  %v71 = vsel %vm69, %v27, 0
  %73 = vmatpush.msra.mxu0 0.0
  %74 = vmatpush.msra.mxu0 0.0
  %75 = vmatpush.msra.mxu0 0.0
  %76 = vmatpush.msra.mxu0 0.0
  %77 = vmatpush.msra.mxu0 0.0
  %78 = vmatpush.msra.mxu0 0.0
  %79 = vmatpush.msra.mxu0 0.0
  %80 = vmatpush.msra.mxu0 0.0
  %81 = vmatpush.msra.mxu0 0.0
  %82 = vmatpush.msra.mxu0 0.0
  %83 = vmatpush.msra.mxu0 0.0
  %84 = vmatpush.msra.mxu0 0.0
  %85 = vmatpush.msra.mxu0 0.0
  %86 = vmatpush.msra.mxu0 0.0
  %87 = vmatpush.msra.mxu0 %v71
  %88 = vmatpush.msra.mxu0 %v26
  %89 = vmatmul.f32.gmra.mxu0 %v58
  %v90 = vpop.f32.mrf.mxu0
  %v91 = vadd.f32 %v39, %v90
  %92 = vmatmul.f32.gmra.mxu0 %v61
  %v93 = vpop.f32.mrf.mxu0
  %v94 = vadd.f32 %v44, %v93
  %95 = vmatmul.f32.gmra.mxu0 %v64
  %v96 = vpop.f32.mrf.mxu0
  %v97 = vadd.f32 %v49, %v96
  %98 = vmatmul.f32.gmra.mxu0 %v67
  %v99 = vpop.f32.mrf.mxu0
  %v100 = vadd.f32 %v54, %v99
  %101 = vdwg.mxu0
  %v102 = vmax.f32 %v91, 0.0
  %v103 = vmax.f32 %v94, 0.0
  %v104 = vmax.f32 %v97, 0.0
  %v105 = vmax.f32 %v100, 0.0
  %v106 = vld [vmem:[%s3] sm:$0xff]
  %v107 = vld [vmem:[%s3 + $0x8] sm:$0xff]
  %v108 = vld [vmem:[%s3 + $0x10] sm:$0xff]
  %v109 = vld [vmem:[%s3 + $0x18] sm:$0xff]
  %v110 = vld [vmem:[%s4] sm:$0xff]
  %v111 = vld [vmem:[%s4 + $0x8] sm:$0xff]
  %v112 = vld [vmem:[%s4 + $0x10] sm:$0xff]
  %v113 = vld [vmem:[%s4 + $0x18] sm:$0xff]
  %115 = vset.pattern.permute.xlu0 0
  %116 = vperm.xlu0 %115, %v110
  %v117 = vpop.permute.xlu0 %116
  %120 = vset.pattern.permute.xlu0 0
  %121 = vperm.xlu0 %120, %v111
  %v122 = vpop.permute.xlu0 %121
  %125 = vset.pattern.permute.xlu0 0
  %126 = vperm.xlu0 %125, %v112
  %v127 = vpop.permute.xlu0 %126
  %130 = vset.pattern.permute.xlu0 0
  %131 = vperm.xlu0 %130, %v113
  %v132 = vpop.permute.xlu0 %131
  %vm134 = vcmask 261120
  %v136 = vsel %vm134, %v106, 0
  %v139 = vsel %vm134, %v107, 0
  %v142 = vsel %vm134, %v108, 0
  %v145 = vsel %vm134, %v109, 0
  %147 = vmatpush.msra.mxu0 0.0
  %148 = vmatpush.msra.mxu0 0.0
  %149 = vmatpush.msra.mxu0 0.0
  %150 = vmatpush.msra.mxu0 0.0
  %151 = vmatpush.msra.mxu0 0.0
  %152 = vmatpush.msra.mxu0 0.0
  %153 = vmatpush.msra.mxu0 0.0
  %154 = vmatpush.msra.mxu0 0.0
  %155 = vmatpush.msra.mxu0 0.0
  %156 = vmatpush.msra.mxu0 0.0
  %157 = vmatpush.msra.mxu0 0.0
  %158 = vmatpush.msra.mxu0 0.0
  %159 = vmatpush.msra.mxu0 %v105
  %160 = vmatpush.msra.mxu0 %v104
  %161 = vmatpush.msra.mxu0 %v103
  %162 = vmatpush.msra.mxu0 %v102
  %163 = vmatmul.f32.gmra.mxu0 %v136
  %v164 = vpop.f32.mrf.mxu0
  %v165 = vadd.f32 %v117, %v164
  %166 = vmatmul.f32.gmra.mxu0 %v139
  %v167 = vpop.f32.mrf.mxu0
  %v168 = vadd.f32 %v122, %v167
  %169 = vmatmul.f32.gmra.mxu0 %v142
  %v170 = vpop.f32.mrf.mxu0
  %v171 = vadd.f32 %v127, %v170
  %172 = vmatmul.f32.gmra.mxu0 %v145
  %v173 = vpop.f32.mrf.mxu0
  %v174 = vadd.f32 %v132, %v173
  %175 = vdwg.mxu0
  %v176 = vmax.f32 %v165, 0.0
  %v177 = vmax.f32 %v168, 0.0
  %v178 = vmax.f32 %v171, 0.0
  %v179 = vmax.f32 %v174, 0.0
  %v180 = vld [vmem:[%s5] sm:$0xff]
  %v181 = vld [vmem:[%s5 + $0x8] sm:$0x1]
  %v182 = vld [vmem:[%s6] sm:$0xff]
  %v183 = vld [vmem:[%s6 + $0x8] sm:$0x1]
  %185 = vset.pattern.permute.xlu0 0
  %186 = vperm.xlu0 %185, %v182
  %v187 = vpop.permute.xlu0 %186
  %190 = vset.pattern.permute.xlu0 0
  %191 = vperm.xlu0 %190, %v183
  %v192 = vpop.permute.xlu0 %191
  %v195 = vsel %vm134, %v180, 0
  %v198 = vsel %vm134, %v181, 0
  %200 = vmatpush.msra.mxu0 0.0
  %201 = vmatpush.msra.mxu0 0.0
  %202 = vmatpush.msra.mxu0 0.0
  %203 = vmatpush.msra.mxu0 0.0
  %204 = vmatpush.msra.mxu0 0.0
  %205 = vmatpush.msra.mxu0 0.0
  %206 = vmatpush.msra.mxu0 0.0
  %207 = vmatpush.msra.mxu0 0.0
  %208 = vmatpush.msra.mxu0 0.0
  %209 = vmatpush.msra.mxu0 0.0
  %210 = vmatpush.msra.mxu0 0.0
  %211 = vmatpush.msra.mxu0 0.0
  %212 = vmatpush.msra.mxu0 %v179
  %213 = vmatpush.msra.mxu0 %v178
  %214 = vmatpush.msra.mxu0 %v177
  %215 = vmatpush.msra.mxu0 %v176
  %216 = vmatmul.f32.gmra.mxu0 %v195
  %v217 = vpop.f32.mrf.mxu0
  %v218 = vadd.f32 %v187, %v217
  %219 = vmatmul.f32.gmra.mxu0 %v198
  %v220 = vpop.f32.mrf.mxu0
  %v221 = vadd.f32 %v192, %v220
  %222 = vdwg.mxu0
  %vm223 = vcmask 64512
  %224 = vst.msk [vmem:[%s7] sm:$0xff] %vm223, %v218
  %vm225 = vcmask 57344
  %226 = vst.msk [vmem:[%s7 + $0x8] sm:$0x1] %vm225, %v221
  // Predicated region
  $region30: #{dqn_forward_t.1} parent=0 // pred_check
    _
  $region31: #{dqn_forward_t.1} parent=0 // pred_check_branch
    %228 = sbr.rel (0) target = $region33
  $region32: #{dqn_forward_t.1} parent=0 // pred_region
    _
  $region33: #{dqn_forward_t.1} parent=0 // pred_fallthru
    _
  // Predicated region
  $region34: #{dqn_forward_t.1} parent=0 // pred_check
    _
  $region35: #{dqn_forward_t.1} parent=0 // pred_check_branch
    %230 = sbr.rel (0) target = $region37
  $region36: #{dqn_forward_t.1} parent=0 // pred_region
    _
  $region37: #{dqn_forward_t.1} parent=0 // pred_fallthru
    _

</llo_original>
